<compile_context>
chip_gen: v7x
topology: tpu7x:2x2x1
jax: 0.10.0
libtpu: 0.0.40
codegen_flags: <defaults>
</compile_context>

<pallas_src>
import functools

import jax
import jax.numpy as jnp
from jax.experimental import pallas as pl
from jax.experimental.pallas import tpu as pltpu


def lstm_kernel(x2d_ref, wx_ref, wh_ref, b_ref, h0_ref, c0_ref,
                h_out_ref, c_out_ref, *, seq_len):
    """x2d: (S*B, Din); wx: (Din, 4H); wh: (H, 4H); b: (1, 4H);
    h0/c0/h_out/c_out: (B, H).  Gate column order is [i | f | o | c];
    the c-gate columns of wx/wh/b are pre-scaled by 2 (tanh-via-sigmoid)."""
    SB, Din = x2d_ref.shape
    B = SB // seq_len
    H = h0_ref.shape[-1]

    # ---- One fused, lane-dense input projection for ALL timesteps ----------
    # (S*B, Din) @ (Din, 4H) on the MXU; bias added once; kept live in vregs
    # (no VMEM scratch round-trip).
    xw = jnp.dot(x2d_ref[...], wx_ref[...],
                 preferred_element_type=jnp.float32) + b_ref[...]

    wh = wh_ref[...]  # (H, 4H) stays resident for the whole sequence.

    h = h0_ref[...]
    c = c0_ref[...]

    # ---- Fully unrolled recurrence: one (B,H)@(H,4H) matmul per step -------
    for t in range(seq_len):
        pre = xw[t * B:(t + 1) * B, :] + jnp.dot(
            h, wh, preferred_element_type=jnp.float32)
        # Single full-width sigmoid over (B, 4H) = one (8,128) vreg.
        sig = jax.nn.sigmoid(pre)
        i_g = sig[:, 0 * H:1 * H]
        f_g = sig[:, 1 * H:2 * H]
        o_g = sig[:, 2 * H:3 * H]
        # c-gate pre-activation was pre-scaled by 2 -> tanh(z) = 2*sig(2z) - 1.
        c_hat = 2.0 * sig[:, 3 * H:4 * H] - 1.0
        c = f_g * c + i_g * c_hat
        h = o_g * jnp.tanh(c)

    # Outputs written exactly once.
    h_out_ref[...] = h
    c_out_ref[...] = c


def fuse_lstm_weights(wx, wh, b):
    """Fuse stacked gate weights (gate order i, f, o, c) along the lane axis.

    wx: (4, Din, H) -> (Din, 4H);  wh: (4, H, H) -> (H, 4H);
    b:  (4, 1, H)   -> (1, 4H).
    The c-gate block is pre-scaled by 2 so the kernel can use the
    tanh(z) = 2*sigmoid(2z) - 1 identity with a single full-width sigmoid.
    Call ONCE (outside the per-step jitted path)."""
    H = wh.shape[-1]
    scale = jnp.array([1.0, 1.0, 1.0, 2.0], dtype=wx.dtype).reshape(4, 1, 1)
    wx_s, wh_s, b_s = wx * scale, wh * scale, b * scale
    wx_f = jnp.moveaxis(wx_s, 0, 1).reshape(wx.shape[1], 4 * H)  # (Din, 4H)
    wh_f = jnp.moveaxis(wh_s, 0, 1).reshape(H, 4 * H)            # (H,   4H)
    b_f = b_s.reshape(1, 4 * H)                                  # (1,   4H)
    return wx_f, wh_f, b_f


def lstm_forward(x, wx_f, wh_f, b_f, h0, c0):
    """x: (S, B, Din); fused weights from fuse_lstm_weights; h0/c0: (B, H).
    Returns (outs, (h, c)) matching the PyTorch module's forward."""
    S, B, Din = x.shape
    H = h0.shape[-1]
    x2d = x.reshape(S * B, Din)  # free layout-compatible reshape in XLA

    vmem = pl.BlockSpec(memory_space=pltpu.MemorySpace.VMEM)
    h_final, c_final = pl.pallas_call(
        functools.partial(lstm_kernel, seq_len=S),
        out_shape=(
            jax.ShapeDtypeStruct((B, H), jnp.float32),
            jax.ShapeDtypeStruct((B, H), jnp.float32),
        ),
        in_specs=[vmem] * 6,
        out_specs=(vmem, vmem),
    )(x2d, wx_f, wh_f, b_f, h0, c0)

    outs = h_final[None]  # torch.unsqueeze(h, 0) + cat of a single element
    return outs, (h_final, c_final)


def lstm_reference(x, wx, wh, b, h0, c0):
    """Pure-JAX reference replicating the PyTorch forward (unfused weights)."""
    def step(carry, x_t):
        h, c = carry
        g = jnp.einsum('bd,gdh->gbh', x_t, wx) + \
            jnp.einsum('bh,ghk->gbk', h, wh) + b
        i_g = jax.nn.sigmoid(g[0])
        f_g = jax.nn.sigmoid(g[1])
        o_g = jax.nn.sigmoid(g[2])
        c_hat = jnp.tanh(g[3])
        c_new = f_g * c + i_g * c_hat
        h_new = o_g * jnp.tanh(c_new)
        return (h_new, c_new), None

    (h, c), _ = jax.lax.scan(step, (h0, c0), x)
    return h[None], (h, c)


if __name__ == "__main__":
    SEQ, BATCH, IN_DIM, HIDDEN = 8, 8, 16, 32

    key = jax.random.PRNGKey(0)
    k_x, k_wx, k_wh, k_bx, k_bh, k_h0, k_c0 = jax.random.split(key, 7)

    x = jax.random.normal(k_x, (SEQ, BATCH, IN_DIM), dtype=jnp.float32)

    # Stacked gate weights, order (i, f, o, c).  Linear weight [H, Din] is
    # pre-transposed to [Din, H]; x-bias and h-bias are summed into one bias.
    wx = 0.1 * jax.random.normal(k_wx, (4, IN_DIM, HIDDEN), dtype=jnp.float32)
    wh = 0.1 * jax.random.normal(k_wh, (4, HIDDEN, HIDDEN), dtype=jnp.float32)
    b = (0.1 * jax.random.normal(k_bx, (4, 1, HIDDEN), dtype=jnp.float32)
         + 0.1 * jax.random.normal(k_bh, (4, 1, HIDDEN), dtype=jnp.float32))

    # Deterministic stand-in for torch.randn initial states (drawn once).
    h0 = jax.random.normal(k_h0, (BATCH, HIDDEN), dtype=jnp.float32)
    c0 = jax.random.normal(k_c0, (BATCH, HIDDEN), dtype=jnp.float32)

    # Weight fusion hoisted out of the per-call path (done once).
    wx_f, wh_f, b_f = fuse_lstm_weights(wx, wh, b)

    fwd = jax.jit(lstm_forward)
    outs, (h, c) = fwd(x, wx_f, wh_f, b_f, h0, c0)
    jax.block_until_ready((outs, h, c))

    outs_ref, (h_ref, c_ref) = lstm_reference(x, wx, wh, b, h0, c0)
    assert outs.shape == (1, BATCH, HIDDEN)
    assert jnp.allclose(outs, outs_ref, atol=1e-5)
    assert jnp.allclose(h, h_ref, atol=1e-5)
    assert jnp.allclose(c, c_ref, atol=1e-5)

    print("KERNEL_OK")
</pallas_src>

<mosaic_0001>
module attributes {stable_mosaic.version = 11 : i64} {
  func.func @lstm_kernel(%arg0: memref<64x16xf32, #tpu.memory_space<vmem>>, %arg1: memref<16x128xf32, #tpu.memory_space<vmem>>, %arg2: memref<32x128xf32, #tpu.memory_space<vmem>>, %arg3: memref<1x128xf32, #tpu.memory_space<vmem>>, %arg4: memref<8x32xf32, #tpu.memory_space<vmem>>, %arg5: memref<8x32xf32, #tpu.memory_space<vmem>>, %arg6: memref<8x32xf32, #tpu.memory_space<vmem>>, %arg7: memref<8x32xf32, #tpu.memory_space<vmem>>) attributes {dimension_semantics = [], scalar_prefetch = 0 : i64, scratch_operands = 0 : i64, tpu.core_type = #tpu.core_type<tc>} {
    %c0 = arith.constant 0 : index
    %c0_0 = arith.constant 0 : index
    %0 = vector.load %arg0[%c0, %c0_0] : memref<64x16xf32, #tpu.memory_space<vmem>>, vector<64x16xf32>
    %c0_1 = arith.constant 0 : index
    %c0_2 = arith.constant 0 : index
    %1 = vector.load %arg1[%c0_1, %c0_2] : memref<16x128xf32, #tpu.memory_space<vmem>>, vector<16x128xf32>
    %cst = arith.constant dense<0.000000e+00> : vector<64x128xf32>
    %2 = tpu.matmul %0, %1, %cst {dimension_numbers = #tpu.dot_dimension_numbers<[1], [0], [0], [1], [0, 0, 1, 1], [], []>} : vector<64x16xf32>, vector<16x128xf32>, vector<64x128xf32> -> vector<64x128xf32>
    %c0_3 = arith.constant 0 : index
    %c0_4 = arith.constant 0 : index
    %3 = vector.load %arg3[%c0_3, %c0_4] : memref<1x128xf32, #tpu.memory_space<vmem>>, vector<1x128xf32>
    %4 = vector.broadcast %3 : vector<1x128xf32> to vector<64x128xf32>
    %5 = arith.addf %2, %4 : vector<64x128xf32>
    %c0_5 = arith.constant 0 : index
    %c0_6 = arith.constant 0 : index
    %6 = vector.load %arg2[%c0_5, %c0_6] : memref<32x128xf32, #tpu.memory_space<vmem>>, vector<32x128xf32>
    %c0_7 = arith.constant 0 : index
    %c0_8 = arith.constant 0 : index
    %7 = vector.load %arg4[%c0_7, %c0_8] : memref<8x32xf32, #tpu.memory_space<vmem>>, vector<8x32xf32>
    %c0_9 = arith.constant 0 : index
    %c0_10 = arith.constant 0 : index
    %8 = vector.load %arg5[%c0_9, %c0_10] : memref<8x32xf32, #tpu.memory_space<vmem>>, vector<8x32xf32>
    %9 = vector.extract_strided_slice %5 {offsets = [0, 0], sizes = [8, 128], strides = [1, 1]} : vector<64x128xf32> to vector<8x128xf32>
    %cst_11 = arith.constant dense<0.000000e+00> : vector<8x128xf32>
    %10 = tpu.matmul %7, %6, %cst_11 {dimension_numbers = #tpu.dot_dimension_numbers<[1], [0], [0], [1], [0, 0, 1, 1], [], []>} : vector<8x32xf32>, vector<32x128xf32>, vector<8x128xf32> -> vector<8x128xf32>
    %11 = arith.addf %9, %10 : vector<8x128xf32>
    %12 = arith.negf %11 : vector<8x128xf32>
    %13 = math.exp %12 : vector<8x128xf32>
    %cst_12 = arith.constant 1.000000e+00 : f32
    %14 = vector.broadcast %cst_12 : f32 to vector<8x128xf32>
    %15 = arith.addf %14, %13 : vector<8x128xf32>
    %16 = arith.divf %14, %15 : vector<8x128xf32>
    %17 = vector.extract_strided_slice %16 {offsets = [0, 0], sizes = [8, 32], strides = [1, 1]} : vector<8x128xf32> to vector<8x32xf32>
    %18 = vector.extract_strided_slice %16 {offsets = [0, 32], sizes = [8, 32], strides = [1, 1]} : vector<8x128xf32> to vector<8x32xf32>
    %19 = vector.extract_strided_slice %16 {offsets = [0, 64], sizes = [8, 32], strides = [1, 1]} : vector<8x128xf32> to vector<8x32xf32>
    %20 = vector.extract_strided_slice %16 {offsets = [0, 96], sizes = [8, 32], strides = [1, 1]} : vector<8x128xf32> to vector<8x32xf32>
    %cst_13 = arith.constant 2.000000e+00 : f32
    %21 = vector.broadcast %cst_13 : f32 to vector<8x32xf32>
    %22 = arith.mulf %21, %20 : vector<8x32xf32>
    %cst_14 = arith.constant 1.000000e+00 : f32
    %23 = vector.broadcast %cst_14 : f32 to vector<8x32xf32>
    %24 = arith.subf %22, %23 : vector<8x32xf32>
    %25 = arith.mulf %18, %8 : vector<8x32xf32>
    %26 = arith.mulf %17, %24 : vector<8x32xf32>
    %27 = arith.addf %25, %26 : vector<8x32xf32>
    %28 = math.tanh %27 : vector<8x32xf32>
    %29 = arith.mulf %19, %28 : vector<8x32xf32>
    %30 = vector.extract_strided_slice %5 {offsets = [8, 0], sizes = [8, 128], strides = [1, 1]} : vector<64x128xf32> to vector<8x128xf32>
    %cst_15 = arith.constant dense<0.000000e+00> : vector<8x128xf32>
    %31 = tpu.matmul %29, %6, %cst_15 {dimension_numbers = #tpu.dot_dimension_numbers<[1], [0], [0], [1], [0, 0, 1, 1], [], []>} : vector<8x32xf32>, vector<32x128xf32>, vector<8x128xf32> -> vector<8x128xf32>
    %32 = arith.addf %30, %31 : vector<8x128xf32>
    %33 = arith.negf %32 : vector<8x128xf32>
    %34 = math.exp %33 : vector<8x128xf32>
    %cst_16 = arith.constant 1.000000e+00 : f32
    %35 = vector.broadcast %cst_16 : f32 to vector<8x128xf32>
    %36 = arith.addf %35, %34 : vector<8x128xf32>
    %37 = arith.divf %35, %36 : vector<8x128xf32>
    %38 = vector.extract_strided_slice %37 {offsets = [0, 0], sizes = [8, 32], strides = [1, 1]} : vector<8x128xf32> to vector<8x32xf32>
    %39 = vector.extract_strided_slice %37 {offsets = [0, 32], sizes = [8, 32], strides = [1, 1]} : vector<8x128xf32> to vector<8x32xf32>
    %40 = vector.extract_strided_slice %37 {offsets = [0, 64], sizes = [8, 32], strides = [1, 1]} : vector<8x128xf32> to vector<8x32xf32>
    %41 = vector.extract_strided_slice %37 {offsets = [0, 96], sizes = [8, 32], strides = [1, 1]} : vector<8x128xf32> to vector<8x32xf32>
    %cst_17 = arith.constant 2.000000e+00 : f32
    %42 = vector.broadcast %cst_17 : f32 to vector<8x32xf32>
    %43 = arith.mulf %42, %41 : vector<8x32xf32>
    %cst_18 = arith.constant 1.000000e+00 : f32
    %44 = vector.broadcast %cst_18 : f32 to vector<8x32xf32>
    %45 = arith.subf %43, %44 : vector<8x32xf32>
    %46 = arith.mulf %39, %27 : vector<8x32xf32>
    %47 = arith.mulf %38, %45 : vector<8x32xf32>
    %48 = arith.addf %46, %47 : vector<8x32xf32>
    %49 = math.tanh %48 : vector<8x32xf32>
    %50 = arith.mulf %40, %49 : vector<8x32xf32>
    %51 = vector.extract_strided_slice %5 {offsets = [16, 0], sizes = [8, 128], strides = [1, 1]} : vector<64x128xf32> to vector<8x128xf32>
    %cst_19 = arith.constant dense<0.000000e+00> : vector<8x128xf32>
    %52 = tpu.matmul %50, %6, %cst_19 {dimension_numbers = #tpu.dot_dimension_numbers<[1], [0], [0], [1], [0, 0, 1, 1], [], []>} : vector<8x32xf32>, vector<32x128xf32>, vector<8x128xf32> -> vector<8x128xf32>
    %53 = arith.addf %51, %52 : vector<8x128xf32>
    %54 = arith.negf %53 : vector<8x128xf32>
    %55 = math.exp %54 : vector<8x128xf32>
    %cst_20 = arith.constant 1.000000e+00 : f32
    %56 = vector.broadcast %cst_20 : f32 to vector<8x128xf32>
    %57 = arith.addf %56, %55 : vector<8x128xf32>
    %58 = arith.divf %56, %57 : vector<8x128xf32>
    %59 = vector.extract_strided_slice %58 {offsets = [0, 0], sizes = [8, 32], strides = [1, 1]} : vector<8x128xf32> to vector<8x32xf32>
    %60 = vector.extract_strided_slice %58 {offsets = [0, 32], sizes = [8, 32], strides = [1, 1]} : vector<8x128xf32> to vector<8x32xf32>
    %61 = vector.extract_strided_slice %58 {offsets = [0, 64], sizes = [8, 32], strides = [1, 1]} : vector<8x128xf32> to vector<8x32xf32>
    %62 = vector.extract_strided_slice %58 {offsets = [0, 96], sizes = [8, 32], strides = [1, 1]} : vector<8x128xf32> to vector<8x32xf32>
    %cst_21 = arith.constant 2.000000e+00 : f32
    %63 = vector.broadcast %cst_21 : f32 to vector<8x32xf32>
    %64 = arith.mulf %63, %62 : vector<8x32xf32>
    %cst_22 = arith.constant 1.000000e+00 : f32
    %65 = vector.broadcast %cst_22 : f32 to vector<8x32xf32>
    %66 = arith.subf %64, %65 : vector<8x32xf32>
    %67 = arith.mulf %60, %48 : vector<8x32xf32>
    %68 = arith.mulf %59, %66 : vector<8x32xf32>
    %69 = arith.addf %67, %68 : vector<8x32xf32>
    %70 = math.tanh %69 : vector<8x32xf32>
    %71 = arith.mulf %61, %70 : vector<8x32xf32>
    %72 = vector.extract_strided_slice %5 {offsets = [24, 0], sizes = [8, 128], strides = [1, 1]} : vector<64x128xf32> to vector<8x128xf32>
    %cst_23 = arith.constant dense<0.000000e+00> : vector<8x128xf32>
    %73 = tpu.matmul %71, %6, %cst_23 {dimension_numbers = #tpu.dot_dimension_numbers<[1], [0], [0], [1], [0, 0, 1, 1], [], []>} : vector<8x32xf32>, vector<32x128xf32>, vector<8x128xf32> -> vector<8x128xf32>
    %74 = arith.addf %72, %73 : vector<8x128xf32>
    %75 = arith.negf %74 : vector<8x128xf32>
    %76 = math.exp %75 : vector<8x128xf32>
    %cst_24 = arith.constant 1.000000e+00 : f32
    %77 = vector.broadcast %cst_24 : f32 to vector<8x128xf32>
    %78 = arith.addf %77, %76 : vector<8x128xf32>
    %79 = arith.divf %77, %78 : vector<8x128xf32>
    %80 = vector.extract_strided_slice %79 {offsets = [0, 0], sizes = [8, 32], strides = [1, 1]} : vector<8x128xf32> to vector<8x32xf32>
    %81 = vector.extract_strided_slice %79 {offsets = [0, 32], sizes = [8, 32], strides = [1, 1]} : vector<8x128xf32> to vector<8x32xf32>
    %82 = vector.extract_strided_slice %79 {offsets = [0, 64], sizes = [8, 32], strides = [1, 1]} : vector<8x128xf32> to vector<8x32xf32>
    %83 = vector.extract_strided_slice %79 {offsets = [0, 96], sizes = [8, 32], strides = [1, 1]} : vector<8x128xf32> to vector<8x32xf32>
    %cst_25 = arith.constant 2.000000e+00 : f32
    %84 = vector.broadcast %cst_25 : f32 to vector<8x32xf32>
    %85 = arith.mulf %84, %83 : vector<8x32xf32>
    %cst_26 = arith.constant 1.000000e+00 : f32
    %86 = vector.broadcast %cst_26 : f32 to vector<8x32xf32>
    %87 = arith.subf %85, %86 : vector<8x32xf32>
    %88 = arith.mulf %81, %69 : vector<8x32xf32>
    %89 = arith.mulf %80, %87 : vector<8x32xf32>
    %90 = arith.addf %88, %89 : vector<8x32xf32>
    %91 = math.tanh %90 : vector<8x32xf32>
    %92 = arith.mulf %82, %91 : vector<8x32xf32>
    %93 = vector.extract_strided_slice %5 {offsets = [32, 0], sizes = [8, 128], strides = [1, 1]} : vector<64x128xf32> to vector<8x128xf32>
    %cst_27 = arith.constant dense<0.000000e+00> : vector<8x128xf32>
    %94 = tpu.matmul %92, %6, %cst_27 {dimension_numbers = #tpu.dot_dimension_numbers<[1], [0], [0], [1], [0, 0, 1, 1], [], []>} : vector<8x32xf32>, vector<32x128xf32>, vector<8x128xf32> -> vector<8x128xf32>
    %95 = arith.addf %93, %94 : vector<8x128xf32>
    %96 = arith.negf %95 : vector<8x128xf32>
    %97 = math.exp %96 : vector<8x128xf32>
    %cst_28 = arith.constant 1.000000e+00 : f32
    %98 = vector.broadcast %cst_28 : f32 to vector<8x128xf32>
    %99 = arith.addf %98, %97 : vector<8x128xf32>
    %100 = arith.divf %98, %99 : vector<8x128xf32>
    %101 = vector.extract_strided_slice %100 {offsets = [0, 0], sizes = [8, 32], strides = [1, 1]} : vector<8x128xf32> to vector<8x32xf32>
    %102 = vector.extract_strided_slice %100 {offsets = [0, 32], sizes = [8, 32], strides = [1, 1]} : vector<8x128xf32> to vector<8x32xf32>
    %103 = vector.extract_strided_slice %100 {offsets = [0, 64], sizes = [8, 32], strides = [1, 1]} : vector<8x128xf32> to vector<8x32xf32>
    %104 = vector.extract_strided_slice %100 {offsets = [0, 96], sizes = [8, 32], strides = [1, 1]} : vector<8x128xf32> to vector<8x32xf32>
    %cst_29 = arith.constant 2.000000e+00 : f32
    %105 = vector.broadcast %cst_29 : f32 to vector<8x32xf32>
    %106 = arith.mulf %105, %104 : vector<8x32xf32>
    %cst_30 = arith.constant 1.000000e+00 : f32
    %107 = vector.broadcast %cst_30 : f32 to vector<8x32xf32>
    %108 = arith.subf %106, %107 : vector<8x32xf32>
    %109 = arith.mulf %102, %90 : vector<8x32xf32>
    %110 = arith.mulf %101, %108 : vector<8x32xf32>
    %111 = arith.addf %109, %110 : vector<8x32xf32>
    %112 = math.tanh %111 : vector<8x32xf32>
    %113 = arith.mulf %103, %112 : vector<8x32xf32>
    %114 = vector.extract_strided_slice %5 {offsets = [40, 0], sizes = [8, 128], strides = [1, 1]} : vector<64x128xf32> to vector<8x128xf32>
    %cst_31 = arith.constant dense<0.000000e+00> : vector<8x128xf32>
    %115 = tpu.matmul %113, %6, %cst_31 {dimension_numbers = #tpu.dot_dimension_numbers<[1], [0], [0], [1], [0, 0, 1, 1], [], []>} : vector<8x32xf32>, vector<32x128xf32>, vector<8x128xf32> -> vector<8x128xf32>
    %116 = arith.addf %114, %115 : vector<8x128xf32>
    %117 = arith.negf %116 : vector<8x128xf32>
    %118 = math.exp %117 : vector<8x128xf32>
    %cst_32 = arith.constant 1.000000e+00 : f32
    %119 = vector.broadcast %cst_32 : f32 to vector<8x128xf32>
    %120 = arith.addf %119, %118 : vector<8x128xf32>
    %121 = arith.divf %119, %120 : vector<8x128xf32>
    %122 = vector.extract_strided_slice %121 {offsets = [0, 0], sizes = [8, 32], strides = [1, 1]} : vector<8x128xf32> to vector<8x32xf32>
    %123 = vector.extract_strided_slice %121 {offsets = [0, 32], sizes = [8, 32], strides = [1, 1]} : vector<8x128xf32> to vector<8x32xf32>
    %124 = vector.extract_strided_slice %121 {offsets = [0, 64], sizes = [8, 32], strides = [1, 1]} : vector<8x128xf32> to vector<8x32xf32>
    %125 = vector.extract_strided_slice %121 {offsets = [0, 96], sizes = [8, 32], strides = [1, 1]} : vector<8x128xf32> to vector<8x32xf32>
    %cst_33 = arith.constant 2.000000e+00 : f32
    %126 = vector.broadcast %cst_33 : f32 to vector<8x32xf32>
    %127 = arith.mulf %126, %125 : vector<8x32xf32>
    %cst_34 = arith.constant 1.000000e+00 : f32
    %128 = vector.broadcast %cst_34 : f32 to vector<8x32xf32>
    %129 = arith.subf %127, %128 : vector<8x32xf32>
    %130 = arith.mulf %123, %111 : vector<8x32xf32>
    %131 = arith.mulf %122, %129 : vector<8x32xf32>
    %132 = arith.addf %130, %131 : vector<8x32xf32>
    %133 = math.tanh %132 : vector<8x32xf32>
    %134 = arith.mulf %124, %133 : vector<8x32xf32>
    %135 = vector.extract_strided_slice %5 {offsets = [48, 0], sizes = [8, 128], strides = [1, 1]} : vector<64x128xf32> to vector<8x128xf32>
    %cst_35 = arith.constant dense<0.000000e+00> : vector<8x128xf32>
    %136 = tpu.matmul %134, %6, %cst_35 {dimension_numbers = #tpu.dot_dimension_numbers<[1], [0], [0], [1], [0, 0, 1, 1], [], []>} : vector<8x32xf32>, vector<32x128xf32>, vector<8x128xf32> -> vector<8x128xf32>
    %137 = arith.addf %135, %136 : vector<8x128xf32>
    %138 = arith.negf %137 : vector<8x128xf32>
    %139 = math.exp %138 : vector<8x128xf32>
    %cst_36 = arith.constant 1.000000e+00 : f32
    %140 = vector.broadcast %cst_36 : f32 to vector<8x128xf32>
    %141 = arith.addf %140, %139 : vector<8x128xf32>
    %142 = arith.divf %140, %141 : vector<8x128xf32>
    %143 = vector.extract_strided_slice %142 {offsets = [0, 0], sizes = [8, 32], strides = [1, 1]} : vector<8x128xf32> to vector<8x32xf32>
    %144 = vector.extract_strided_slice %142 {offsets = [0, 32], sizes = [8, 32], strides = [1, 1]} : vector<8x128xf32> to vector<8x32xf32>
    %145 = vector.extract_strided_slice %142 {offsets = [0, 64], sizes = [8, 32], strides = [1, 1]} : vector<8x128xf32> to vector<8x32xf32>
    %146 = vector.extract_strided_slice %142 {offsets = [0, 96], sizes = [8, 32], strides = [1, 1]} : vector<8x128xf32> to vector<8x32xf32>
    %cst_37 = arith.constant 2.000000e+00 : f32
    %147 = vector.broadcast %cst_37 : f32 to vector<8x32xf32>
    %148 = arith.mulf %147, %146 : vector<8x32xf32>
    %cst_38 = arith.constant 1.000000e+00 : f32
    %149 = vector.broadcast %cst_38 : f32 to vector<8x32xf32>
    %150 = arith.subf %148, %149 : vector<8x32xf32>
    %151 = arith.mulf %144, %132 : vector<8x32xf32>
    %152 = arith.mulf %143, %150 : vector<8x32xf32>
    %153 = arith.addf %151, %152 : vector<8x32xf32>
    %154 = math.tanh %153 : vector<8x32xf32>
    %155 = arith.mulf %145, %154 : vector<8x32xf32>
    %156 = vector.extract_strided_slice %5 {offsets = [56, 0], sizes = [8, 128], strides = [1, 1]} : vector<64x128xf32> to vector<8x128xf32>
    %cst_39 = arith.constant dense<0.000000e+00> : vector<8x128xf32>
    %157 = tpu.matmul %155, %6, %cst_39 {dimension_numbers = #tpu.dot_dimension_numbers<[1], [0], [0], [1], [0, 0, 1, 1], [], []>} : vector<8x32xf32>, vector<32x128xf32>, vector<8x128xf32> -> vector<8x128xf32>
    %158 = arith.addf %156, %157 : vector<8x128xf32>
    %159 = arith.negf %158 : vector<8x128xf32>
    %160 = math.exp %159 : vector<8x128xf32>
    %cst_40 = arith.constant 1.000000e+00 : f32
    %161 = vector.broadcast %cst_40 : f32 to vector<8x128xf32>
    %162 = arith.addf %161, %160 : vector<8x128xf32>
    %163 = arith.divf %161, %162 : vector<8x128xf32>
    %164 = vector.extract_strided_slice %163 {offsets = [0, 0], sizes = [8, 32], strides = [1, 1]} : vector<8x128xf32> to vector<8x32xf32>
    %165 = vector.extract_strided_slice %163 {offsets = [0, 32], sizes = [8, 32], strides = [1, 1]} : vector<8x128xf32> to vector<8x32xf32>
    %166 = vector.extract_strided_slice %163 {offsets = [0, 64], sizes = [8, 32], strides = [1, 1]} : vector<8x128xf32> to vector<8x32xf32>
    %167 = vector.extract_strided_slice %163 {offsets = [0, 96], sizes = [8, 32], strides = [1, 1]} : vector<8x128xf32> to vector<8x32xf32>
    %cst_41 = arith.constant 2.000000e+00 : f32
    %168 = vector.broadcast %cst_41 : f32 to vector<8x32xf32>
    %169 = arith.mulf %168, %167 : vector<8x32xf32>
    %cst_42 = arith.constant 1.000000e+00 : f32
    %170 = vector.broadcast %cst_42 : f32 to vector<8x32xf32>
    %171 = arith.subf %169, %170 : vector<8x32xf32>
    %172 = arith.mulf %165, %153 : vector<8x32xf32>
    %173 = arith.mulf %164, %171 : vector<8x32xf32>
    %174 = arith.addf %172, %173 : vector<8x32xf32>
    %175 = math.tanh %174 : vector<8x32xf32>
    %176 = arith.mulf %166, %175 : vector<8x32xf32>
    %c0_43 = arith.constant 0 : index
    %c0_44 = arith.constant 0 : index
    %177 = vector.load %arg6[%c0_43, %c0_44] : memref<8x32xf32, #tpu.memory_space<vmem>>, vector<8x32xf32>
    tpu.vector_store %arg6[%c0_43, %c0_44], %176 {strides = array<i32>} : memref<8x32xf32, #tpu.memory_space<vmem>>, vector<8x32xf32>,
    %c0_45 = arith.constant 0 : index
    %c0_46 = arith.constant 0 : index
    %178 = vector.load %arg7[%c0_45, %c0_46] : memref<8x32xf32, #tpu.memory_space<vmem>>, vector<8x32xf32>
    tpu.vector_store %arg7[%c0_45, %c0_46], %174 {strides = array<i32>} : memref<8x32xf32, #tpu.memory_space<vmem>>, vector<8x32xf32>,
    return
  }
}

</mosaic_0001>

<llo_original>
// kernel: lstm_forward.1
$region0: #{lstm_forward.1}
  #allocation0 [shape = 'u32[]', space=smem, size = 0x4, offset = 0x4, fixed_abs, tag = 'smem constant byte address 0x4 - core index']
  #allocation1 [shape = 'u32[144,128]{1,0:T(1,128)}', space=vmem, size = 0x12000, scoped, tag = 'internal scratch']
  %s0 = inlined_call_operand.hbm [shape: f32[64,16], index: 0, kind: input, shape index: {}]
  %s1 = inlined_call_operand.hbm [shape: f32[16,128], index: 1, kind: input, shape index: {}]
  %s2 = inlined_call_operand.hbm [shape: f32[32,128], index: 2, kind: input, shape index: {}]
  %s3 = inlined_call_operand.vmem [shape: f32[1,128], index: 3, kind: input, shape index: {}]
  %s4 = inlined_call_operand.vmem [shape: f32[8,32], index: 4, kind: input, shape index: {}]
  %s5 = inlined_call_operand.vmem [shape: f32[8,32], index: 5, kind: input, shape index: {}]
  %s6 = inlined_call_operand.vmem [shape: f32[8,32], index: 6, kind: output, shape index: {0}]
  %s7 = inlined_call_operand.hbm [shape: f32[8,32], index: 7, kind: output, shape index: {1}]
  %8 = xla_tuple %s6, %s7
  %s9 = sld [smem:[#allocation0]]
  $region54: #{lstm_forward.1} parent=0
    _
  %s11 = ssub.s32 1, %s9
  %s12 = scalar_select 0, %s11, %s9
  $region1: #{lstm_forward.1} parent=0
    #allocation2 [shape = 'u8[32768]{0}', space=vmem, size = 0x8000, scoped, tag = 'input window, operand 0, single buffered']
    #allocation3 [shape = 's32[1]{0}', space=sflag, size = 0x4, scoped, tag = 'scoped memory for lstm_forward.1']
    #allocation4 [shape = 's32[1]{0}', space=sflag, size = 0x4, scoped, tag = 'scoped memory for lstm_forward.1']
    #allocation5 [shape = 'u8[8192]{0}', space=vmem, size = 0x2000, scoped, tag = 'input window, operand 1, single buffered']
    #allocation6 [shape = 's32[1]{0}', space=sflag, size = 0x4, scoped, tag = 'scoped memory for lstm_forward.1']
    #allocation7 [shape = 'u8[16384]{0}', space=vmem, size = 0x4000, scoped, tag = 'input window, operand 2, single buffered']
    #allocation8 [shape = 'u8[4096]{0}', space=vmem, size = 0x1000, scoped, tag = 'output window, operand 1, single buffered']
    %13 = vsyncpa [#allocation3], 0
    %14 = vsyncpa [#allocation6], 0
    %15 = vsyncpa [#allocation4], 0
    // Predicated region
    $region2: #{lstm_forward.1} parent=1 // pred_check
      _
    $region3: #{lstm_forward.1} parent=1 // pred_check_branch
      %17 = sbr.rel (0) target = $region5
    $region4: #{lstm_forward.1} parent=1 // pred_region
      %s19 = ssub.s32 1024, 1024
      %20 = vsyncadd [#allocation3], %s19
      %s21 = sshll.u32 [#allocation2], 4
      %s22 = int_to_ptr.vmem [resolvable:$true] %s21
      %27 = dma.hbm_to_vmem [thread:$0]  %s0, 1024, %s22, [#allocation3], 128, 128, 8
    $region5: #{lstm_forward.1} parent=1 // pred_fallthru
      _
    // Predicated region
    $region6: #{lstm_forward.1} parent=1 // pred_check
      _
    $region7: #{lstm_forward.1} parent=1 // pred_check_branch
      %29 = sbr.rel (0) target = $region9
    $region8: #{lstm_forward.1} parent=1 // pred_region
      %s31 = ssub.s32 256, 256
      %32 = vsyncadd [#allocation6], %s31
      %s33 = sshll.u32 [#allocation5], 4
      %s34 = int_to_ptr.vmem [resolvable:$true] %s33
      %39 = dma.hbm_to_vmem [thread:$0]  %s1, 256, %s34, [#allocation6], 128, 128, 8
    $region9: #{lstm_forward.1} parent=1 // pred_fallthru
      _
    // Predicated region
    $region10: #{lstm_forward.1} parent=1 // pred_check
      _
    $region11: #{lstm_forward.1} parent=1 // pred_check_branch
      %41 = sbr.rel (0) target = $region13
    $region12: #{lstm_forward.1} parent=1 // pred_region
      %s43 = ssub.s32 512, 512
      %44 = vsyncadd [#allocation6], %s43
      %s45 = sshll.u32 [#allocation7], 4
      %s46 = int_to_ptr.vmem [resolvable:$true] %s45
      %51 = dma.hbm_to_vmem [thread:$0]  %s2, 512, %s46, [#allocation6], 128, 128, 8
    $region13: #{lstm_forward.1} parent=1 // pred_fallthru
      _
    // Predicated region
    $region14: #{lstm_forward.1} parent=1 // pred_check
      _
    $region15: #{lstm_forward.1} parent=1 // pred_check_branch
      %53 = sbr.rel (0) target = $region17
    $region16: #{lstm_forward.1} parent=1 // pred_region
      _
    $region17: #{lstm_forward.1} parent=1 // pred_fallthru
      _
    // Predicated region
    $region18: #{lstm_forward.1} parent=1 // pred_check
      _
    $region19: #{lstm_forward.1} parent=1 // pred_check_branch
      %55 = sbr.rel (0) target = $region21
    $region20: #{lstm_forward.1} parent=1 // pred_region
      _
    $region21: #{lstm_forward.1} parent=1 // pred_fallthru
      _
    // Predicated region
    $region22: #{lstm_forward.1} parent=1 // pred_check
      _
    $region23: #{lstm_forward.1} parent=1 // pred_check_branch
      %57 = sbr.rel (0) target = $region25
    $region24: #{lstm_forward.1} parent=1 // pred_region
      _
    $region25: #{lstm_forward.1} parent=1 // pred_fallthru
      _
    // Predicated region
    $region26: #{lstm_forward.1} parent=1 // pred_check
      _
    $region27: #{lstm_forward.1} parent=1 // pred_check_branch
      %59 = sbr.rel (0) target = $region29
    $region28: #{lstm_forward.1} parent=1 // pred_region
      %60 = dma.done [#allocation3], 1024
    $region29: #{lstm_forward.1} parent=1 // pred_fallthru
      _
    // Predicated region
    $region30: #{lstm_forward.1} parent=1 // pred_check
      _
    $region31: #{lstm_forward.1} parent=1 // pred_check_branch
      %62 = sbr.rel (0) target = $region33
    $region32: #{lstm_forward.1} parent=1 // pred_region
      %63 = dma.done [#allocation6], 256
    $region33: #{lstm_forward.1} parent=1 // pred_fallthru
      _
    // Predicated region
    $region34: #{lstm_forward.1} parent=1 // pred_check
      _
    $region35: #{lstm_forward.1} parent=1 // pred_check_branch
      %65 = sbr.rel (0) target = $region37
    $region36: #{lstm_forward.1} parent=1 // pred_region
      %66 = dma.done [#allocation6], 512
    $region37: #{lstm_forward.1} parent=1 // pred_fallthru
      _
    %v67 = vld [vmem:[#allocation2] sm:$0xff]
    %v68 = vld [vmem:[#allocation2 + $0x8] sm:$0xff]
    %v69 = vld [vmem:[#allocation2 + $0x10] sm:$0xff]
    %v70 = vld [vmem:[#allocation2 + $0x18] sm:$0xff]
    %v71 = vld [vmem:[#allocation2 + $0x20] sm:$0xff]
    %v72 = vld [vmem:[#allocation2 + $0x28] sm:$0xff]
    %v73 = vld [vmem:[#allocation2 + $0x30] sm:$0xff]
    %v74 = vld [vmem:[#allocation2 + $0x38] sm:$0xff]
    %v75 = vld [vmem:[#allocation5] sm:$0xff]
    %v76 = vld [vmem:[#allocation5 + $0x8] sm:$0xff]
    %v77 = vld [vmem:[%s3] sm:$0x1]
    %v79 = vlaneseq
    %v80 = vshrl.u32 %v79, 7
    %v81 = vsub.s32 0, %v80
    %v82 = vrot.slane %v77, %v81
    %vm84 = vcmask 130048
    %v86 = vsel %vm84, %v67, 0
    %v89 = vsel %vm84, %v68, 0
    %v92 = vsel %vm84, %v69, 0
    %v95 = vsel %vm84, %v70, 0
    %v98 = vsel %vm84, %v71, 0
    %v101 = vsel %vm84, %v72, 0
    %v104 = vsel %vm84, %v73, 0
    %v107 = vsel %vm84, %v74, 0
    %109 = vmatprep.subr.mxu0 0.0
    %110 = vmatpush1.msra.mxu0 %v75
    %111 = vmatprep.subr.mxu0 0.0
    %112 = vmatpush1.msra.mxu0 %v76
    %113 = vmatprep.subr.mxu0 0.0
    %114 = vmatpush1.msra.mxu0 0.0
    %115 = vmatprep.subr.mxu0 0.0
    %116 = vmatpush1.msra.mxu0 0.0
    %117 = vmatprep.subr.mxu0 0.0
    %118 = vmatpush1.msra.mxu0 0.0
    %119 = vmatprep.subr.mxu0 0.0
    %120 = vmatpush1.msra.mxu0 0.0
    %121 = vmatprep.subr.mxu0 0.0
    %122 = vmatpush1.msra.mxu0 0.0
    %123 = vmatprep.subr.mxu0 0.0
    %124 = vmatpush1.msra.mxu0 0.0
    %125 = vmatprep.subr.mxu0 0.0
    %126 = vmatpush1.msra.mxu0 0.0
    %127 = vmatprep.subr.mxu0 0.0
    %128 = vmatpush1.msra.mxu0 0.0
    %129 = vmatprep.subr.mxu0 0.0
    %130 = vmatpush1.msra.mxu0 0.0
    %131 = vmatprep.subr.mxu0 0.0
    %132 = vmatpush1.msra.mxu0 0.0
    %133 = vmatprep.subr.mxu0 0.0
    %134 = vmatpush1.msra.mxu0 0.0
    %135 = vmatprep.subr.mxu0 0.0
    %136 = vmatpush1.msra.mxu0 0.0
    %137 = vmatprep.subr.mxu0 0.0
    %138 = vmatpush1.msra.mxu0 0.0
    %139 = vmatprep.subr.mxu0 0.0
    %140 = vmatpush1.msra.mxu0 0.0
    %141 = vmatprep.subr.mxu0 0.0
    %142 = vmatpush1.msra.mxu0 0.0
    %143 = vmatprep.subr.mxu0 0.0
    %144 = vmatpush1.msra.mxu0 0.0
    %145 = vmatprep.subr.mxu0 0.0
    %146 = vmatpush1.msra.mxu0 0.0
    %147 = vmatprep.subr.mxu0 0.0
    %148 = vmatpush1.msra.mxu0 0.0
    %149 = vmatprep.subr.mxu0 0.0
    %150 = vmatpush1.msra.mxu0 0.0
    %151 = vmatprep.subr.mxu0 0.0
    %152 = vmatpush1.msra.mxu0 0.0
    %153 = vmatprep.subr.mxu0 0.0
    %154 = vmatpush1.msra.mxu0 0.0
    %155 = vmatprep.subr.mxu0 0.0
    %156 = vmatpush1.msra.mxu0 0.0
    %157 = vmatprep.subr.mxu0 0.0
    %158 = vmatpush1.msra.mxu0 0.0
    %159 = vmatprep.subr.mxu0 0.0
    %160 = vmatpush1.msra.mxu0 0.0
    %161 = vmatprep.subr.mxu0 0.0
    %162 = vmatpush1.msra.mxu0 0.0
    %163 = vmatprep.subr.mxu0 0.0
    %164 = vmatpush1.msra.mxu0 0.0
    %165 = vmatprep.subr.mxu0 0.0
    %166 = vmatpush1.msra.mxu0 0.0
    %167 = vmatprep.subr.mxu0 0.0
    %168 = vmatpush1.msra.mxu0 0.0
    %169 = vmatprep.subr.mxu0 0.0
    %170 = vmatpush1.msra.mxu0 0.0
    %171 = vmatprep.subr.mxu0 0.0
    %172 = vmatpush1.msra.mxu0 0.0
    %173 = vmatprep.mubr.f32.mxu0 0.0
    %174 = vmatmul.mubr.f32.gmra.mrb[0].mxu0 %v86
    %v175 = vpop.f32.mrb[0].mxu0
    %v176 = vadd.f32 %v82, %v175
    %v177 = vpop.f32.mrb[0].mxu0
    %178 = vmatprep.mubr.f32.mxu0 0.0
    %179 = vmatmul.mubr.f32.gmra.mrb[0].mxu0 %v89
    %v180 = vpop.f32.mrb[0].mxu0
    %v181 = vadd.f32 %v82, %v180
    %v182 = vpop.f32.mrb[0].mxu0
    %183 = vmatprep.mubr.f32.mxu0 0.0
    %184 = vmatmul.mubr.f32.gmra.mrb[0].mxu0 %v92
    %v185 = vpop.f32.mrb[0].mxu0
    %v186 = vadd.f32 %v82, %v185
    %v187 = vpop.f32.mrb[0].mxu0
    %188 = vmatprep.mubr.f32.mxu0 0.0
    %189 = vmatmul.mubr.f32.gmra.mrb[0].mxu0 %v95
    %v190 = vpop.f32.mrb[0].mxu0
    %v191 = vadd.f32 %v82, %v190
    %v192 = vpop.f32.mrb[0].mxu0
    %193 = vmatprep.mubr.f32.mxu0 0.0
    %194 = vmatmul.mubr.f32.gmra.mrb[0].mxu0 %v98
    %v195 = vpop.f32.mrb[0].mxu0
    %v196 = vadd.f32 %v82, %v195
    %v197 = vpop.f32.mrb[0].mxu0
    %198 = vmatprep.mubr.f32.mxu0 0.0
    %199 = vmatmul.mubr.f32.gmra.mrb[0].mxu0 %v101
    %v200 = vpop.f32.mrb[0].mxu0
    %v201 = vadd.f32 %v82, %v200
    %v202 = vpop.f32.mrb[0].mxu0
    %203 = vmatprep.mubr.f32.mxu0 0.0
    %204 = vmatmul.mubr.f32.gmra.mrb[0].mxu0 %v104
    %v205 = vpop.f32.mrb[0].mxu0
    %v206 = vadd.f32 %v82, %v205
    %v207 = vpop.f32.mrb[0].mxu0
    %208 = vmatprep.mubr.f32.mxu0 0.0
    %209 = vmatmul.mubr.f32.gmra.mrb[0].mxu0 %v107
    %v210 = vpop.f32.mrb[0].mxu0
    %v211 = vadd.f32 %v82, %v210
    %v212 = vpop.f32.mrb[0].mxu0
    %213 = vdwg.mxu0
    %v214 = vld [vmem:[#allocation7] sm:$0xff]
    %v215 = vld [vmem:[#allocation7 + $0x8] sm:$0xff]
    %v216 = vld [vmem:[#allocation7 + $0x10] sm:$0xff]
    %v217 = vld [vmem:[#allocation7 + $0x18] sm:$0xff]
    %v218 = vld [vmem:[%s4] sm:$0xff]
    %v219 = vld [vmem:[%s5] sm:$0xff]
    %vm220 = vcmask 261120
    %v222 = vsel %vm220, %v218, 0
    %224 = vmatprep.subr.mxu0 0.0
    %225 = vmatpush1.msra.mxu0 %v214
    %226 = vmatprep.subr.mxu0 0.0
    %227 = vmatpush1.msra.mxu0 %v215
    %228 = vmatprep.subr.mxu0 0.0
    %229 = vmatpush1.msra.mxu0 %v216
    %230 = vmatprep.subr.mxu0 0.0
    %231 = vmatpush1.msra.mxu0 %v217
    %232 = vmatprep.subr.mxu0 0.0
    %233 = vmatpush1.msra.mxu0 0.0
    %234 = vmatprep.subr.mxu0 0.0
    %235 = vmatpush1.msra.mxu0 0.0
    %236 = vmatprep.subr.mxu0 0.0
    %237 = vmatpush1.msra.mxu0 0.0
    %238 = vmatprep.subr.mxu0 0.0
    %239 = vmatpush1.msra.mxu0 0.0
    %240 = vmatprep.subr.mxu0 0.0
    %241 = vmatpush1.msra.mxu0 0.0
    %242 = vmatprep.subr.mxu0 0.0
    %243 = vmatpush1.msra.mxu0 0.0
    %244 = vmatprep.subr.mxu0 0.0
    %245 = vmatpush1.msra.mxu0 0.0
    %246 = vmatprep.subr.mxu0 0.0
    %247 = vmatpush1.msra.mxu0 0.0
    %248 = vmatprep.subr.mxu0 0.0
    %249 = vmatpush1.msra.mxu0 0.0
    %250 = vmatprep.subr.mxu0 0.0
    %251 = vmatpush1.msra.mxu0 0.0
    %252 = vmatprep.subr.mxu0 0.0
    %253 = vmatpush1.msra.mxu0 0.0
    %254 = vmatprep.subr.mxu0 0.0
    %255 = vmatpush1.msra.mxu0 0.0
    %256 = vmatprep.subr.mxu0 0.0
    %257 = vmatpush1.msra.mxu0 0.0
    %258 = vmatprep.subr.mxu0 0.0
    %259 = vmatpush1.msra.mxu0 0.0
    %260 = vmatprep.subr.mxu0 0.0
    %261 = vmatpush1.msra.mxu0 0.0
    %262 = vmatprep.subr.mxu0 0.0
    %263 = vmatpush1.msra.mxu0 0.0
    %264 = vmatprep.subr.mxu0 0.0
    %265 = vmatpush1.msra.mxu0 0.0
    %266 = vmatprep.subr.mxu0 0.0
    %267 = vmatpush1.msra.mxu0 0.0
    %268 = vmatprep.subr.mxu0 0.0
    %269 = vmatpush1.msra.mxu0 0.0
    %270 = vmatprep.subr.mxu0 0.0
    %271 = vmatpush1.msra.mxu0 0.0
    %272 = vmatprep.subr.mxu0 0.0
    %273 = vmatpush1.msra.mxu0 0.0
    %274 = vmatprep.subr.mxu0 0.0
    %275 = vmatpush1.msra.mxu0 0.0
    %276 = vmatprep.subr.mxu0 0.0
    %277 = vmatpush1.msra.mxu0 0.0
    %278 = vmatprep.subr.mxu0 0.0
    %279 = vmatpush1.msra.mxu0 0.0
    %280 = vmatprep.subr.mxu0 0.0
    %281 = vmatpush1.msra.mxu0 0.0
    %282 = vmatprep.subr.mxu0 0.0
    %283 = vmatpush1.msra.mxu0 0.0
    %284 = vmatprep.subr.mxu0 0.0
    %285 = vmatpush1.msra.mxu0 0.0
    %286 = vmatprep.subr.mxu0 0.0
    %287 = vmatpush1.msra.mxu0 0.0
    %288 = vmatprep.mubr.f32.mxu0 0.0
    %289 = vmatmul.mubr.f32.gmra.mrb[0].mxu0 %v222
    %v290 = vpop.f32.mrb[0].mxu0
    %v291 = vadd.f32 0.0, %v290
    %v292 = vpop.f32.mrb[0].mxu0
    %293 = vdwg.mxu0
    %v294 = vadd.f32 %v176, %v291
    %v295 = vxor.u32 %v294, 2147483648
    %v296 = vmul.f32 %v295, 1.442695
    %v297 = vpow.pop %v296
    %v298 = vadd.f32 %v297, 1.0
    %v299 = vrcp.pop %v298
    %v300 = vmul.f32 1.0, %v299
    %v301 = vmul.f32 %v300, 2.0
    %v302 = vsub.f32 %v301, 1.0
    %304 = vrot.lane.b32.xlu0 %v219, 32
    %v305 = vpop.permute.xlu0 %304
    %v307 = vmul.f32 %v300, %v305
    %309 = vrot.lane.b32.xlu0 %v302, 32
    %v310 = vpop.permute.xlu0 %309
    %v312 = vmul.f32 %v300, %v310
    %314 = vrot.lane.b32.xlu0 %v312, 32
    %v315 = vpop.permute.xlu0 %314
    %v317 = vadd.f32 %v307, %v315
    %v318 = vtanh.pop %v317
    %320 = vrot.lane.b32.xlu0 %v318, 32
    %v321 = vpop.permute.xlu0 %320
    %v323 = vmul.f32 %v300, %v321
    %325 = vrot.lane.b32.xlu0 %v323, 64
    %v326 = vpop.permute.xlu0 %325
    %v327 = vsel %vm220, %v326, 0
    %329 = vmatprep.subr.mxu0 0.0
    %330 = vmatpush1.msra.mxu0 %v214
    %331 = vmatprep.subr.mxu0 0.0
    %332 = vmatpush1.msra.mxu0 %v215
    %333 = vmatprep.subr.mxu0 0.0
    %334 = vmatpush1.msra.mxu0 %v216
    %335 = vmatprep.subr.mxu0 0.0
    %336 = vmatpush1.msra.mxu0 %v217
    %337 = vmatprep.subr.mxu0 0.0
    %338 = vmatpush1.msra.mxu0 0.0
    %339 = vmatprep.subr.mxu0 0.0
    %340 = vmatpush1.msra.mxu0 0.0
    %341 = vmatprep.subr.mxu0 0.0
    %342 = vmatpush1.msra.mxu0 0.0
    %343 = vmatprep.subr.mxu0 0.0
    %344 = vmatpush1.msra.mxu0 0.0
    %345 = vmatprep.subr.mxu0 0.0
    %346 = vmatpush1.msra.mxu0 0.0
    %347 = vmatprep.subr.mxu0 0.0
    %348 = vmatpush1.msra.mxu0 0.0
    %349 = vmatprep.subr.mxu0 0.0
    %350 = vmatpush1.msra.mxu0 0.0
    %351 = vmatprep.subr.mxu0 0.0
    %352 = vmatpush1.msra.mxu0 0.0
    %353 = vmatprep.subr.mxu0 0.0
    %354 = vmatpush1.msra.mxu0 0.0
    %355 = vmatprep.subr.mxu0 0.0
    %356 = vmatpush1.msra.mxu0 0.0
    %357 = vmatprep.subr.mxu0 0.0
    %358 = vmatpush1.msra.mxu0 0.0
    %359 = vmatprep.subr.mxu0 0.0
    %360 = vmatpush1.msra.mxu0 0.0
    %361 = vmatprep.subr.mxu0 0.0
    %362 = vmatpush1.msra.mxu0 0.0
    %363 = vmatprep.subr.mxu0 0.0
    %364 = vmatpush1.msra.mxu0 0.0
    %365 = vmatprep.subr.mxu0 0.0
    %366 = vmatpush1.msra.mxu0 0.0
    %367 = vmatprep.subr.mxu0 0.0
    %368 = vmatpush1.msra.mxu0 0.0
    %369 = vmatprep.subr.mxu0 0.0
    %370 = vmatpush1.msra.mxu0 0.0
    %371 = vmatprep.subr.mxu0 0.0
    %372 = vmatpush1.msra.mxu0 0.0
    %373 = vmatprep.subr.mxu0 0.0
    %374 = vmatpush1.msra.mxu0 0.0
    %375 = vmatprep.subr.mxu0 0.0
    %376 = vmatpush1.msra.mxu0 0.0
    %377 = vmatprep.subr.mxu0 0.0
    %378 = vmatpush1.msra.mxu0 0.0
    %379 = vmatprep.subr.mxu0 0.0
    %380 = vmatpush1.msra.mxu0 0.0
    %381 = vmatprep.subr.mxu0 0.0
    %382 = vmatpush1.msra.mxu0 0.0
    %383 = vmatprep.subr.mxu0 0.0
    %384 = vmatpush1.msra.mxu0 0.0
    %385 = vmatprep.subr.mxu0 0.0
    %386 = vmatpush1.msra.mxu0 0.0
    %387 = vmatprep.subr.mxu0 0.0
    %388 = vmatpush1.msra.mxu0 0.0
    %389 = vmatprep.subr.mxu0 0.0
    %390 = vmatpush1.msra.mxu0 0.0
    %391 = vmatprep.subr.mxu0 0.0
    %392 = vmatpush1.msra.mxu0 0.0
    %393 = vmatprep.mubr.f32.mxu0 0.0
    %394 = vmatmul.mubr.f32.gmra.mrb[0].mxu0 %v327
    %v395 = vpop.f32.mrb[0].mxu0
    %v396 = vadd.f32 0.0, %v395
    %v397 = vpop.f32.mrb[0].mxu0
    %398 = vdwg.mxu0
    %v399 = vadd.f32 %v181, %v396
    %v400 = vxor.u32 %v399, 2147483648
    %v401 = vmul.f32 %v400, 1.442695
    %v402 = vpow.pop %v401
    %v403 = vadd.f32 %v402, 1.0
    %v404 = vrcp.pop %v403
    %v405 = vmul.f32 1.0, %v404
    %v406 = vmul.f32 %v405, 2.0
    %v407 = vsub.f32 %v406, 1.0
    %v408 = vmul.f32 %v405, %v317
    %410 = vrot.lane.b32.xlu0 %v407, 32
    %v411 = vpop.permute.xlu0 %410
    %v413 = vmul.f32 %v405, %v411
    %415 = vrot.lane.b32.xlu0 %v413, 32
    %v416 = vpop.permute.xlu0 %415
    %v418 = vadd.f32 %v408, %v416
    %v419 = vtanh.pop %v418
    %421 = vrot.lane.b32.xlu0 %v419, 32
    %v422 = vpop.permute.xlu0 %421
    %v424 = vmul.f32 %v405, %v422
    %426 = vrot.lane.b32.xlu0 %v424, 64
    %v427 = vpop.permute.xlu0 %426
    %v428 = vsel %vm220, %v427, 0
    %430 = vmatprep.subr.mxu0 0.0
    %431 = vmatpush1.msra.mxu0 %v214
    %432 = vmatprep.subr.mxu0 0.0
    %433 = vmatpush1.msra.mxu0 %v215
    %434 = vmatprep.subr.mxu0 0.0
    %435 = vmatpush1.msra.mxu0 %v216
    %436 = vmatprep.subr.mxu0 0.0
    %437 = vmatpush1.msra.mxu0 %v217
    %438 = vmatprep.subr.mxu0 0.0
    %439 = vmatpush1.msra.mxu0 0.0
    %440 = vmatprep.subr.mxu0 0.0
    %441 = vmatpush1.msra.mxu0 0.0
    %442 = vmatprep.subr.mxu0 0.0
    %443 = vmatpush1.msra.mxu0 0.0
    %444 = vmatprep.subr.mxu0 0.0
    %445 = vmatpush1.msra.mxu0 0.0
    %446 = vmatprep.subr.mxu0 0.0
    %447 = vmatpush1.msra.mxu0 0.0
    %448 = vmatprep.subr.mxu0 0.0
    %449 = vmatpush1.msra.mxu0 0.0
    %450 = vmatprep.subr.mxu0 0.0
    %451 = vmatpush1.msra.mxu0 0.0
    %452 = vmatprep.subr.mxu0 0.0
    %453 = vmatpush1.msra.mxu0 0.0
    %454 = vmatprep.subr.mxu0 0.0
    %455 = vmatpush1.msra.mxu0 0.0
    %456 = vmatprep.subr.mxu0 0.0
    %457 = vmatpush1.msra.mxu0 0.0
    %458 = vmatprep.subr.mxu0 0.0
    %459 = vmatpush1.msra.mxu0 0.0
    %460 = vmatprep.subr.mxu0 0.0
    %461 = vmatpush1.msra.mxu0 0.0
    %462 = vmatprep.subr.mxu0 0.0
    %463 = vmatpush1.msra.mxu0 0.0
    %464 = vmatprep.subr.mxu0 0.0
    %465 = vmatpush1.msra.mxu0 0.0
    %466 = vmatprep.subr.mxu0 0.0
    %467 = vmatpush1.msra.mxu0 0.0
    %468 = vmatprep.subr.mxu0 0.0
    %469 = vmatpush1.msra.mxu0 0.0
    %470 = vmatprep.subr.mxu0 0.0
    %471 = vmatpush1.msra.mxu0 0.0
    %472 = vmatprep.subr.mxu0 0.0
    %473 = vmatpush1.msra.mxu0 0.0
    %474 = vmatprep.subr.mxu0 0.0
    %475 = vmatpush1.msra.mxu0 0.0
    %476 = vmatprep.subr.mxu0 0.0
    %477 = vmatpush1.msra.mxu0 0.0
    %478 = vmatprep.subr.mxu0 0.0
    %479 = vmatpush1.msra.mxu0 0.0
    %480 = vmatprep.subr.mxu0 0.0
    %481 = vmatpush1.msra.mxu0 0.0
    %482 = vmatprep.subr.mxu0 0.0
    %483 = vmatpush1.msra.mxu0 0.0
    %484 = vmatprep.subr.mxu0 0.0
    %485 = vmatpush1.msra.mxu0 0.0
    %486 = vmatprep.subr.mxu0 0.0
    %487 = vmatpush1.msra.mxu0 0.0
    %488 = vmatprep.subr.mxu0 0.0
    %489 = vmatpush1.msra.mxu0 0.0
    %490 = vmatprep.subr.mxu0 0.0
    %491 = vmatpush1.msra.mxu0 0.0
    %492 = vmatprep.subr.mxu0 0.0
    %493 = vmatpush1.msra.mxu0 0.0
    %494 = vmatprep.mubr.f32.mxu0 0.0
    %495 = vmatmul.mubr.f32.gmra.mrb[0].mxu0 %v428
    %v496 = vpop.f32.mrb[0].mxu0
    %v497 = vadd.f32 0.0, %v496
    %v498 = vpop.f32.mrb[0].mxu0
    %499 = vdwg.mxu0
    %v500 = vadd.f32 %v186, %v497
    %v501 = vxor.u32 %v500, 2147483648
    %v502 = vmul.f32 %v501, 1.442695
    %v503 = vpow.pop %v502
    %v504 = vadd.f32 %v503, 1.0
    %v505 = vrcp.pop %v504
    %v506 = vmul.f32 1.0, %v505
    %v507 = vmul.f32 %v506, 2.0
    %v508 = vsub.f32 %v507, 1.0
    %v509 = vmul.f32 %v506, %v418
    %511 = vrot.lane.b32.xlu0 %v508, 32
    %v512 = vpop.permute.xlu0 %511
    %v514 = vmul.f32 %v506, %v512
    %516 = vrot.lane.b32.xlu0 %v514, 32
    %v517 = vpop.permute.xlu0 %516
    %v519 = vadd.f32 %v509, %v517
    %v520 = vtanh.pop %v519
    %522 = vrot.lane.b32.xlu0 %v520, 32
    %v523 = vpop.permute.xlu0 %522
    %v525 = vmul.f32 %v506, %v523
    %527 = vrot.lane.b32.xlu0 %v525, 64
    %v528 = vpop.permute.xlu0 %527
    %v529 = vsel %vm220, %v528, 0
    %531 = vmatprep.subr.mxu0 0.0
    %532 = vmatpush1.msra.mxu0 %v214
    %533 = vmatprep.subr.mxu0 0.0
    %534 = vmatpush1.msra.mxu0 %v215
    %535 = vmatprep.subr.mxu0 0.0
    %536 = vmatpush1.msra.mxu0 %v216
    %537 = vmatprep.subr.mxu0 0.0
    %538 = vmatpush1.msra.mxu0 %v217
    %539 = vmatprep.subr.mxu0 0.0
    %540 = vmatpush1.msra.mxu0 0.0
    %541 = vmatprep.subr.mxu0 0.0
    %542 = vmatpush1.msra.mxu0 0.0
    %543 = vmatprep.subr.mxu0 0.0
    %544 = vmatpush1.msra.mxu0 0.0
    %545 = vmatprep.subr.mxu0 0.0
    %546 = vmatpush1.msra.mxu0 0.0
    %547 = vmatprep.subr.mxu0 0.0
    %548 = vmatpush1.msra.mxu0 0.0
    %549 = vmatprep.subr.mxu0 0.0
    %550 = vmatpush1.msra.mxu0 0.0
    %551 = vmatprep.subr.mxu0 0.0
    %552 = vmatpush1.msra.mxu0 0.0
    %553 = vmatprep.subr.mxu0 0.0
    %554 = vmatpush1.msra.mxu0 0.0
    %555 = vmatprep.subr.mxu0 0.0
    %556 = vmatpush1.msra.mxu0 0.0
    %557 = vmatprep.subr.mxu0 0.0
    %558 = vmatpush1.msra.mxu0 0.0
    %559 = vmatprep.subr.mxu0 0.0
    %560 = vmatpush1.msra.mxu0 0.0
    %561 = vmatprep.subr.mxu0 0.0
    %562 = vmatpush1.msra.mxu0 0.0
    %563 = vmatprep.subr.mxu0 0.0
    %564 = vmatpush1.msra.mxu0 0.0
    %565 = vmatprep.subr.mxu0 0.0
    %566 = vmatpush1.msra.mxu0 0.0
    %567 = vmatprep.subr.mxu0 0.0
    %568 = vmatpush1.msra.mxu0 0.0
    %569 = vmatprep.subr.mxu0 0.0
    %570 = vmatpush1.msra.mxu0 0.0
    %571 = vmatprep.subr.mxu0 0.0
    %572 = vmatpush1.msra.mxu0 0.0
    %573 = vmatprep.subr.mxu0 0.0
    %574 = vmatpush1.msra.mxu0 0.0
    %575 = vmatprep.subr.mxu0 0.0
    %576 = vmatpush1.msra.mxu0 0.0
    %577 = vmatprep.subr.mxu0 0.0
    %578 = vmatpush1.msra.mxu0 0.0
    %579 = vmatprep.subr.mxu0 0.0
    %580 = vmatpush1.msra.mxu0 0.0
    %581 = vmatprep.subr.mxu0 0.0
    %582 = vmatpush1.msra.mxu0 0.0
    %583 = vmatprep.subr.mxu0 0.0
    %584 = vmatpush1.msra.mxu0 0.0
    %585 = vmatprep.subr.mxu0 0.0
    %586 = vmatpush1.msra.mxu0 0.0
    %587 = vmatprep.subr.mxu0 0.0
    %588 = vmatpush1.msra.mxu0 0.0
    %589 = vmatprep.subr.mxu0 0.0
    %590 = vmatpush1.msra.mxu0 0.0
    %591 = vmatprep.subr.mxu0 0.0
    %592 = vmatpush1.msra.mxu0 0.0
    %593 = vmatprep.subr.mxu0 0.0
    %594 = vmatpush1.msra.mxu0 0.0
    %595 = vmatprep.mubr.f32.mxu0 0.0
    %596 = vmatmul.mubr.f32.gmra.mrb[0].mxu0 %v529
    %v597 = vpop.f32.mrb[0].mxu0
    %v598 = vadd.f32 0.0, %v597
    %v599 = vpop.f32.mrb[0].mxu0
    %600 = vdwg.mxu0
    %v601 = vadd.f32 %v191, %v598
    %v602 = vxor.u32 %v601, 2147483648
    %v603 = vmul.f32 %v602, 1.442695
    %v604 = vpow.pop %v603
    %v605 = vadd.f32 %v604, 1.0
    %v606 = vrcp.pop %v605
    %v607 = vmul.f32 1.0, %v606
    %v608 = vmul.f32 %v607, 2.0
    %v609 = vsub.f32 %v608, 1.0
    %v610 = vmul.f32 %v607, %v519
    %612 = vrot.lane.b32.xlu0 %v609, 32
    %v613 = vpop.permute.xlu0 %612
    %v615 = vmul.f32 %v607, %v613
    %617 = vrot.lane.b32.xlu0 %v615, 32
    %v618 = vpop.permute.xlu0 %617
    %v620 = vadd.f32 %v610, %v618
    %v621 = vtanh.pop %v620
    %623 = vrot.lane.b32.xlu0 %v621, 32
    %v624 = vpop.permute.xlu0 %623
    %v626 = vmul.f32 %v607, %v624
    %628 = vrot.lane.b32.xlu0 %v626, 64
    %v629 = vpop.permute.xlu0 %628
    %v630 = vsel %vm220, %v629, 0
    %632 = vmatprep.subr.mxu0 0.0
    %633 = vmatpush1.msra.mxu0 %v214
    %634 = vmatprep.subr.mxu0 0.0
    %635 = vmatpush1.msra.mxu0 %v215
    %636 = vmatprep.subr.mxu0 0.0
    %637 = vmatpush1.msra.mxu0 %v216
    %638 = vmatprep.subr.mxu0 0.0
    %639 = vmatpush1.msra.mxu0 %v217
    %640 = vmatprep.subr.mxu0 0.0
    %641 = vmatpush1.msra.mxu0 0.0
    %642 = vmatprep.subr.mxu0 0.0
    %643 = vmatpush1.msra.mxu0 0.0
    %644 = vmatprep.subr.mxu0 0.0
    %645 = vmatpush1.msra.mxu0 0.0
    %646 = vmatprep.subr.mxu0 0.0
    %647 = vmatpush1.msra.mxu0 0.0
    %648 = vmatprep.subr.mxu0 0.0
    %649 = vmatpush1.msra.mxu0 0.0
    %650 = vmatprep.subr.mxu0 0.0
    %651 = vmatpush1.msra.mxu0 0.0
    %652 = vmatprep.subr.mxu0 0.0
    %653 = vmatpush1.msra.mxu0 0.0
    %654 = vmatprep.subr.mxu0 0.0
    %655 = vmatpush1.msra.mxu0 0.0
    %656 = vmatprep.subr.mxu0 0.0
    %657 = vmatpush1.msra.mxu0 0.0
    %658 = vmatprep.subr.mxu0 0.0
    %659 = vmatpush1.msra.mxu0 0.0
    %660 = vmatprep.subr.mxu0 0.0
    %661 = vmatpush1.msra.mxu0 0.0
    %662 = vmatprep.subr.mxu0 0.0
    %663 = vmatpush1.msra.mxu0 0.0
    %664 = vmatprep.subr.mxu0 0.0
    %665 = vmatpush1.msra.mxu0 0.0
    %666 = vmatprep.subr.mxu0 0.0
    %667 = vmatpush1.msra.mxu0 0.0
    %668 = vmatprep.subr.mxu0 0.0
    %669 = vmatpush1.msra.mxu0 0.0
    %670 = vmatprep.subr.mxu0 0.0
    %671 = vmatpush1.msra.mxu0 0.0
    %672 = vmatprep.subr.mxu0 0.0
    %673 = vmatpush1.msra.mxu0 0.0
    %674 = vmatprep.subr.mxu0 0.0
    %675 = vmatpush1.msra.mxu0 0.0
    %676 = vmatprep.subr.mxu0 0.0
    %677 = vmatpush1.msra.mxu0 0.0
    %678 = vmatprep.subr.mxu0 0.0
    %679 = vmatpush1.msra.mxu0 0.0
    %680 = vmatprep.subr.mxu0 0.0
    %681 = vmatpush1.msra.mxu0 0.0
    %682 = vmatprep.subr.mxu0 0.0
    %683 = vmatpush1.msra.mxu0 0.0
    %684 = vmatprep.subr.mxu0 0.0
    %685 = vmatpush1.msra.mxu0 0.0
    %686 = vmatprep.subr.mxu0 0.0
    %687 = vmatpush1.msra.mxu0 0.0
    %688 = vmatprep.subr.mxu0 0.0
    %689 = vmatpush1.msra.mxu0 0.0
    %690 = vmatprep.subr.mxu0 0.0
    %691 = vmatpush1.msra.mxu0 0.0
    %692 = vmatprep.subr.mxu0 0.0
    %693 = vmatpush1.msra.mxu0 0.0
    %694 = vmatprep.subr.mxu0 0.0
    %695 = vmatpush1.msra.mxu0 0.0
    %696 = vmatprep.mubr.f32.mxu0 0.0
    %697 = vmatmul.mubr.f32.gmra.mrb[0].mxu0 %v630
    %v698 = vpop.f32.mrb[0].mxu0
    %v699 = vadd.f32 0.0, %v698
    %v700 = vpop.f32.mrb[0].mxu0
    %701 = vdwg.mxu0
    %v702 = vadd.f32 %v196, %v699
    %v703 = vxor.u32 %v702, 2147483648
    %v704 = vmul.f32 %v703, 1.442695
    %v705 = vpow.pop %v704
    %v706 = vadd.f32 %v705, 1.0
    %v707 = vrcp.pop %v706
    %v708 = vmul.f32 1.0, %v707
    %v709 = vmul.f32 %v708, 2.0
    %v710 = vsub.f32 %v709, 1.0
    %v711 = vmul.f32 %v708, %v620
    %713 = vrot.lane.b32.xlu0 %v710, 32
    %v714 = vpop.permute.xlu0 %713
    %v716 = vmul.f32 %v708, %v714
    %718 = vrot.lane.b32.xlu0 %v716, 32
    %v719 = vpop.permute.xlu0 %718
    %v721 = vadd.f32 %v711, %v719
    %v722 = vtanh.pop %v721
    %724 = vrot.lane.b32.xlu0 %v722, 32
    %v725 = vpop.permute.xlu0 %724
    %v727 = vmul.f32 %v708, %v725
    %729 = vrot.lane.b32.xlu0 %v727, 64
    %v730 = vpop.permute.xlu0 %729
    %v731 = vsel %vm220, %v730, 0
    %733 = vmatprep.subr.mxu0 0.0
    %734 = vmatpush1.msra.mxu0 %v214
    %735 = vmatprep.subr.mxu0 0.0
    %736 = vmatpush1.msra.mxu0 %v215
    %737 = vmatprep.subr.mxu0 0.0
    %738 = vmatpush1.msra.mxu0 %v216
    %739 = vmatprep.subr.mxu0 0.0
    %740 = vmatpush1.msra.mxu0 %v217
    %741 = vmatprep.subr.mxu0 0.0
    %742 = vmatpush1.msra.mxu0 0.0
    %743 = vmatprep.subr.mxu0 0.0
    %744 = vmatpush1.msra.mxu0 0.0
    %745 = vmatprep.subr.mxu0 0.0
    %746 = vmatpush1.msra.mxu0 0.0
    %747 = vmatprep.subr.mxu0 0.0
    %748 = vmatpush1.msra.mxu0 0.0
    %749 = vmatprep.subr.mxu0 0.0
    %750 = vmatpush1.msra.mxu0 0.0
    %751 = vmatprep.subr.mxu0 0.0
    %752 = vmatpush1.msra.mxu0 0.0
    %753 = vmatprep.subr.mxu0 0.0
    %754 = vmatpush1.msra.mxu0 0.0
    %755 = vmatprep.subr.mxu0 0.0
    %756 = vmatpush1.msra.mxu0 0.0
    %757 = vmatprep.subr.mxu0 0.0
    %758 = vmatpush1.msra.mxu0 0.0
    %759 = vmatprep.subr.mxu0 0.0
    %760 = vmatpush1.msra.mxu0 0.0
    %761 = vmatprep.subr.mxu0 0.0
    %762 = vmatpush1.msra.mxu0 0.0
    %763 = vmatprep.subr.mxu0 0.0
    %764 = vmatpush1.msra.mxu0 0.0
    %765 = vmatprep.subr.mxu0 0.0
    %766 = vmatpush1.msra.mxu0 0.0
    %767 = vmatprep.subr.mxu0 0.0
    %768 = vmatpush1.msra.mxu0 0.0
    %769 = vmatprep.subr.mxu0 0.0
    %770 = vmatpush1.msra.mxu0 0.0
    %771 = vmatprep.subr.mxu0 0.0
    %772 = vmatpush1.msra.mxu0 0.0
    %773 = vmatprep.subr.mxu0 0.0
    %774 = vmatpush1.msra.mxu0 0.0
    %775 = vmatprep.subr.mxu0 0.0
    %776 = vmatpush1.msra.mxu0 0.0
    %777 = vmatprep.subr.mxu0 0.0
    %778 = vmatpush1.msra.mxu0 0.0
    %779 = vmatprep.subr.mxu0 0.0
    %780 = vmatpush1.msra.mxu0 0.0
    %781 = vmatprep.subr.mxu0 0.0
    %782 = vmatpush1.msra.mxu0 0.0
    %783 = vmatprep.subr.mxu0 0.0
    %784 = vmatpush1.msra.mxu0 0.0
    %785 = vmatprep.subr.mxu0 0.0
    %786 = vmatpush1.msra.mxu0 0.0
    %787 = vmatprep.subr.mxu0 0.0
    %788 = vmatpush1.msra.mxu0 0.0
    %789 = vmatprep.subr.mxu0 0.0
    %790 = vmatpush1.msra.mxu0 0.0
    %791 = vmatprep.subr.mxu0 0.0
    %792 = vmatpush1.msra.mxu0 0.0
    %793 = vmatprep.subr.mxu0 0.0
    %794 = vmatpush1.msra.mxu0 0.0
    %795 = vmatprep.subr.mxu0 0.0
    %796 = vmatpush1.msra.mxu0 0.0
    %797 = vmatprep.mubr.f32.mxu0 0.0
    %798 = vmatmul.mubr.f32.gmra.mrb[0].mxu0 %v731
    %v799 = vpop.f32.mrb[0].mxu0
    %v800 = vadd.f32 0.0, %v799
    %v801 = vpop.f32.mrb[0].mxu0
    %802 = vdwg.mxu0
    %v803 = vadd.f32 %v201, %v800
    %v804 = vxor.u32 %v803, 2147483648
    %v805 = vmul.f32 %v804, 1.442695
    %v806 = vpow.pop %v805
    %v807 = vadd.f32 %v806, 1.0
    %v808 = vrcp.pop %v807
    %v809 = vmul.f32 1.0, %v808
    %v810 = vmul.f32 %v809, 2.0
    %v811 = vsub.f32 %v810, 1.0
    %v812 = vmul.f32 %v809, %v721
    %814 = vrot.lane.b32.xlu0 %v811, 32
    %v815 = vpop.permute.xlu0 %814
    %v817 = vmul.f32 %v809, %v815
    %819 = vrot.lane.b32.xlu0 %v817, 32
    %v820 = vpop.permute.xlu0 %819
    %v822 = vadd.f32 %v812, %v820
    %v823 = vtanh.pop %v822
    %825 = vrot.lane.b32.xlu0 %v823, 32
    %v826 = vpop.permute.xlu0 %825
    %v828 = vmul.f32 %v809, %v826
    %830 = vrot.lane.b32.xlu0 %v828, 64
    %v831 = vpop.permute.xlu0 %830
    %v832 = vsel %vm220, %v831, 0
    %834 = vmatprep.subr.mxu0 0.0
    %835 = vmatpush1.msra.mxu0 %v214
    %836 = vmatprep.subr.mxu0 0.0
    %837 = vmatpush1.msra.mxu0 %v215
    %838 = vmatprep.subr.mxu0 0.0
    %839 = vmatpush1.msra.mxu0 %v216
    %840 = vmatprep.subr.mxu0 0.0
    %841 = vmatpush1.msra.mxu0 %v217
    %842 = vmatprep.subr.mxu0 0.0
    %843 = vmatpush1.msra.mxu0 0.0
    %844 = vmatprep.subr.mxu0 0.0
    %845 = vmatpush1.msra.mxu0 0.0
    %846 = vmatprep.subr.mxu0 0.0
    %847 = vmatpush1.msra.mxu0 0.0
    %848 = vmatprep.subr.mxu0 0.0
    %849 = vmatpush1.msra.mxu0 0.0
    %850 = vmatprep.subr.mxu0 0.0
    %851 = vmatpush1.msra.mxu0 0.0
    %852 = vmatprep.subr.mxu0 0.0
    %853 = vmatpush1.msra.mxu0 0.0
    %854 = vmatprep.subr.mxu0 0.0
    %855 = vmatpush1.msra.mxu0 0.0
    %856 = vmatprep.subr.mxu0 0.0
    %857 = vmatpush1.msra.mxu0 0.0
    %858 = vmatprep.subr.mxu0 0.0
    %859 = vmatpush1.msra.mxu0 0.0
    %860 = vmatprep.subr.mxu0 0.0
    %861 = vmatpush1.msra.mxu0 0.0
    %862 = vmatprep.subr.mxu0 0.0
    %863 = vmatpush1.msra.mxu0 0.0
    %864 = vmatprep.subr.mxu0 0.0
    %865 = vmatpush1.msra.mxu0 0.0
    %866 = vmatprep.subr.mxu0 0.0
    %867 = vmatpush1.msra.mxu0 0.0
    %868 = vmatprep.subr.mxu0 0.0
    %869 = vmatpush1.msra.mxu0 0.0
    %870 = vmatprep.subr.mxu0 0.0
    %871 = vmatpush1.msra.mxu0 0.0
    %872 = vmatprep.subr.mxu0 0.0
    %873 = vmatpush1.msra.mxu0 0.0
    %874 = vmatprep.subr.mxu0 0.0
    %875 = vmatpush1.msra.mxu0 0.0
    %876 = vmatprep.subr.mxu0 0.0
    %877 = vmatpush1.msra.mxu0 0.0
    %878 = vmatprep.subr.mxu0 0.0
    %879 = vmatpush1.msra.mxu0 0.0
    %880 = vmatprep.subr.mxu0 0.0
    %881 = vmatpush1.msra.mxu0 0.0
    %882 = vmatprep.subr.mxu0 0.0
    %883 = vmatpush1.msra.mxu0 0.0
    %884 = vmatprep.subr.mxu0 0.0
    %885 = vmatpush1.msra.mxu0 0.0
    %886 = vmatprep.subr.mxu0 0.0
    %887 = vmatpush1.msra.mxu0 0.0
    %888 = vmatprep.subr.mxu0 0.0
    %889 = vmatpush1.msra.mxu0 0.0
    %890 = vmatprep.subr.mxu0 0.0
    %891 = vmatpush1.msra.mxu0 0.0
    %892 = vmatprep.subr.mxu0 0.0
    %893 = vmatpush1.msra.mxu0 0.0
    %894 = vmatprep.subr.mxu0 0.0
    %895 = vmatpush1.msra.mxu0 0.0
    %896 = vmatprep.subr.mxu0 0.0
    %897 = vmatpush1.msra.mxu0 0.0
    %898 = vmatprep.mubr.f32.mxu0 0.0
    %899 = vmatmul.mubr.f32.gmra.mrb[0].mxu0 %v832
    %v900 = vpop.f32.mrb[0].mxu0
    %v901 = vadd.f32 0.0, %v900
    %v902 = vpop.f32.mrb[0].mxu0
    %903 = vdwg.mxu0
    %v904 = vadd.f32 %v206, %v901
    %v905 = vxor.u32 %v904, 2147483648
    %v906 = vmul.f32 %v905, 1.442695
    %v907 = vpow.pop %v906
    %v908 = vadd.f32 %v907, 1.0
    %v909 = vrcp.pop %v908
    %v910 = vmul.f32 1.0, %v909
    %v911 = vmul.f32 %v910, 2.0
    %v912 = vsub.f32 %v911, 1.0
    %v913 = vmul.f32 %v910, %v822
    %915 = vrot.lane.b32.xlu0 %v912, 32
    %v916 = vpop.permute.xlu0 %915
    %v918 = vmul.f32 %v910, %v916
    %920 = vrot.lane.b32.xlu0 %v918, 32
    %v921 = vpop.permute.xlu0 %920
    %v923 = vadd.f32 %v913, %v921
    %v924 = vtanh.pop %v923
    %926 = vrot.lane.b32.xlu0 %v924, 32
    %v927 = vpop.permute.xlu0 %926
    %v929 = vmul.f32 %v910, %v927
    %931 = vrot.lane.b32.xlu0 %v929, 64
    %v932 = vpop.permute.xlu0 %931
    %v933 = vsel %vm220, %v932, 0
    %935 = vmatprep.subr.mxu0 0.0
    %936 = vmatpush1.msra.mxu0 %v214
    %937 = vmatprep.subr.mxu0 0.0
    %938 = vmatpush1.msra.mxu0 %v215
    %939 = vmatprep.subr.mxu0 0.0
    %940 = vmatpush1.msra.mxu0 %v216
    %941 = vmatprep.subr.mxu0 0.0
    %942 = vmatpush1.msra.mxu0 %v217
    %943 = vmatprep.subr.mxu0 0.0
    %944 = vmatpush1.msra.mxu0 0.0
    %945 = vmatprep.subr.mxu0 0.0
    %946 = vmatpush1.msra.mxu0 0.0
    %947 = vmatprep.subr.mxu0 0.0
    %948 = vmatpush1.msra.mxu0 0.0
    %949 = vmatprep.subr.mxu0 0.0
    %950 = vmatpush1.msra.mxu0 0.0
    %951 = vmatprep.subr.mxu0 0.0
    %952 = vmatpush1.msra.mxu0 0.0
    %953 = vmatprep.subr.mxu0 0.0
    %954 = vmatpush1.msra.mxu0 0.0
    %955 = vmatprep.subr.mxu0 0.0
    %956 = vmatpush1.msra.mxu0 0.0
    %957 = vmatprep.subr.mxu0 0.0
    %958 = vmatpush1.msra.mxu0 0.0
    %959 = vmatprep.subr.mxu0 0.0
    %960 = vmatpush1.msra.mxu0 0.0
    %961 = vmatprep.subr.mxu0 0.0
    %962 = vmatpush1.msra.mxu0 0.0
    %963 = vmatprep.subr.mxu0 0.0
    %964 = vmatpush1.msra.mxu0 0.0
    %965 = vmatprep.subr.mxu0 0.0
    %966 = vmatpush1.msra.mxu0 0.0
    %967 = vmatprep.subr.mxu0 0.0
    %968 = vmatpush1.msra.mxu0 0.0
    %969 = vmatprep.subr.mxu0 0.0
    %970 = vmatpush1.msra.mxu0 0.0
    %971 = vmatprep.subr.mxu0 0.0
    %972 = vmatpush1.msra.mxu0 0.0
    %973 = vmatprep.subr.mxu0 0.0
    %974 = vmatpush1.msra.mxu0 0.0
    %975 = vmatprep.subr.mxu0 0.0
    %976 = vmatpush1.msra.mxu0 0.0
    %977 = vmatprep.subr.mxu0 0.0
    %978 = vmatpush1.msra.mxu0 0.0
    %979 = vmatprep.subr.mxu0 0.0
    %980 = vmatpush1.msra.mxu0 0.0
    %981 = vmatprep.subr.mxu0 0.0
    %982 = vmatpush1.msra.mxu0 0.0
    %983 = vmatprep.subr.mxu0 0.0
    %984 = vmatpush1.msra.mxu0 0.0
    %985 = vmatprep.subr.mxu0 0.0
    %986 = vmatpush1.msra.mxu0 0.0
    %987 = vmatprep.subr.mxu0 0.0
    %988 = vmatpush1.msra.mxu0 0.0
    %989 = vmatprep.subr.mxu0 0.0
    %990 = vmatpush1.msra.mxu0 0.0
    %991 = vmatprep.subr.mxu0 0.0
    %992 = vmatpush1.msra.mxu0 0.0
    %993 = vmatprep.subr.mxu0 0.0
    %994 = vmatpush1.msra.mxu0 0.0
    %995 = vmatprep.subr.mxu0 0.0
    %996 = vmatpush1.msra.mxu0 0.0
    %997 = vmatprep.subr.mxu0 0.0
    %998 = vmatpush1.msra.mxu0 0.0
    %999 = vmatprep.mubr.f32.mxu0 0.0
    %1000 = vmatmul.mubr.f32.gmra.mrb[0].mxu0 %v933
    %v1001 = vpop.f32.mrb[0].mxu0
    %v1002 = vadd.f32 0.0, %v1001
    %v1003 = vpop.f32.mrb[0].mxu0
    %1004 = vdwg.mxu0
    %v1005 = vadd.f32 %v211, %v1002
    %v1006 = vxor.u32 %v1005, 2147483648
    %v1007 = vmul.f32 %v1006, 1.442695
    %v1008 = vpow.pop %v1007
    %v1009 = vadd.f32 %v1008, 1.0
    %v1010 = vrcp.pop %v1009
    %v1011 = vmul.f32 1.0, %v1010
    %v1012 = vmul.f32 %v1011, 2.0
    %v1013 = vsub.f32 %v1012, 1.0
    %v1014 = vmul.f32 %v1011, %v923
    %1016 = vrot.lane.b32.xlu0 %v1013, 32
    %v1017 = vpop.permute.xlu0 %1016
    %v1019 = vmul.f32 %v1011, %v1017
    %1021 = vrot.lane.b32.xlu0 %v1019, 32
    %v1022 = vpop.permute.xlu0 %1021
    %v1024 = vadd.f32 %v1014, %v1022
    %v1025 = vtanh.pop %v1024
    %1027 = vrot.lane.b32.xlu0 %v1025, 32
    %v1028 = vpop.permute.xlu0 %1027
    %v1030 = vmul.f32 %v1011, %v1028
    %1032 = vrot.lane.b32.xlu0 %v1030, 64
    %v1033 = vpop.permute.xlu0 %1032
    %1035 = vst.msk [vmem:[%s6] sm:$0xff] %vm220, %v1033
    %1037 = vrot.lane.b32.xlu0 %v1024, 96
    %v1038 = vpop.permute.xlu0 %1037
    %1040 = vst.msk [vmem:[#allocation8] sm:$0xff] %vm220, %v1038
    // Predicated region
    $region38: #{lstm_forward.1} parent=1 // pred_check
      _
    $region39: #{lstm_forward.1} parent=1 // pred_check_branch
      %1042 = sbr.rel (0) target = $region41
    $region40: #{lstm_forward.1} parent=1 // pred_region
      _
    $region41: #{lstm_forward.1} parent=1 // pred_fallthru
      _
    // Predicated region
    $region42: #{lstm_forward.1} parent=1 // pred_check
      _
    $region43: #{lstm_forward.1} parent=1 // pred_check_branch
      %1044 = sbr.rel (0) target = $region45
    $region44: #{lstm_forward.1} parent=1 // pred_region
      %s1046 = ssub.s32 128, 128
      %1047 = vsyncadd [#allocation4], %s1046
      %s1049 = sshll.u32 [#allocation8], 4
      %s1050 = int_to_ptr.vmem [resolvable:$true] %s1049
      %1052 = dma.vmem_to_hbm [thread:$0]  %s1050, 128, %s7, [#allocation4]
    $region45: #{lstm_forward.1} parent=1 // pred_fallthru
      _
    // Predicated region
    $region46: #{lstm_forward.1} parent=1 // pred_check
      _
    $region47: #{lstm_forward.1} parent=1 // pred_check_branch
      %1054 = sbr.rel (0) target = $region49
    $region48: #{lstm_forward.1} parent=1 // pred_region
      _
    $region49: #{lstm_forward.1} parent=1 // pred_fallthru
      _
    // Predicated region
    $region50: #{lstm_forward.1} parent=1 // pred_check
      _
    $region51: #{lstm_forward.1} parent=1 // pred_check_branch
      %1056 = sbr.rel (0) target = $region53
    $region52: #{lstm_forward.1} parent=1 // pred_region
      %1057 = dma.done [#allocation4], 128
    $region53: #{lstm_forward.1} parent=1 // pred_fallthru
      _
    %1058 = vsyncpa [#allocation3], 1
    %1059 = vsyncpa [#allocation6], 1
    %1060 = vsyncpa [#allocation4], 1

</llo_original>
